<compile_context>
chip_gen: v6e
topology: v6e:2x2x1
jax: 0.10.0
libtpu: 0.0.40
codegen_flags: <defaults>
</compile_context>

<pallas_src>
import functools

import jax
import jax.numpy as jnp
import numpy as np
from jax import lax
from jax.experimental import pallas as pl
from jax.experimental.pallas import tpu as pltpu

_VMEM_LIMIT = 32 * 1024 * 1024  # modest scoped limit; default tiles use ~5 MiB


def _round_up(x, m):
    return (x + m - 1) // m * m


def _sublane_multiple(dtype):
    # Rows per vreg sublane group: 8 for 4-byte, 16 for 2-byte, 32 for 1-byte dtypes.
    return {4: 8, 2: 16, 1: 32}[jnp.dtype(dtype).itemsize]


def _pick_tile(dim, preferred, align=128):
    """Largest tile <= preferred (multiple of `align`) without extra padding waste."""
    preferred = max(align, (preferred // align) * align)
    padded = _round_up(dim, align)
    if padded <= preferred:
        return padded
    for t in range(preferred, align - 1, -align):
        if _round_up(dim, t) == padded:      # no padding beyond the 128-alignment
            return t
    return preferred


# ----------------------------------------------------------------------------------
# Parameter preparation (hoisted out of the forward path)
# ----------------------------------------------------------------------------------
def prepare_dam_params(weights, mergers, biases=None, bias_mergers=None, *,
                       param_dtype=None, tn=256, tk=512):
    """One-time prep: optional dtype cast (e.g. bf16 streaming), K-major transpose of
    the weight stack, and tile padding.  weights: (num_models, OUT, IN);
    mergers: (num_models, IN); biases: (num_models, OUT) or None."""
    num_models, OUT, IN = weights.shape
    if param_dtype is not None:
        weights = weights.astype(param_dtype)
        mergers = mergers.astype(param_dtype)
    tn = _pick_tile(OUT, tn)
    tk = _pick_tile(IN, tk)
    N_p = _round_up(OUT, tn)
    K_p = _round_up(IN, tk)
    # K-major weight stack (num_models, IN, OUT): blocks feed the MXU with the
    # contracting dim on the sublane axis -> no per-step transpose in any kernel.
    weights_t = jnp.pad(jnp.swapaxes(weights, 1, 2),
                        ((0, 0), (0, K_p - IN), (0, N_p - OUT)))
    mergers_p = jnp.pad(mergers, ((0, 0), (0, K_p - IN)))   # lane-major (decode path)
    mergers_t = jnp.transpose(mergers_p)                    # sublane-major (merge kernel)
    return dict(weights_t=weights_t, mergers=mergers_p, mergers_t=mergers_t,
                biases=biases, bias_mergers=bias_mergers,
                has_bias=(biases is not None and bias_mergers is not None),
                num_models=num_models, out_features=OUT, in_features=IN,
                N_p=N_p, K_p=K_p, tn=tn, tk=tk)


# ----------------------------------------------------------------------------------
# Kernels
# ----------------------------------------------------------------------------------
def dam_merge_kernel(mergers_t_ref, weights_t_ref, wm_ref, *, num_models):
    """Merged weight tile, K-major: wm[k, n] = sum_i mergers[i, k] * W_i[n, k]."""
    # TODO(synk): merge math could run in bf16 on v6e/v7x (bf16 VALU); kept f32 for v5e.
    acc = (mergers_t_ref[:, pl.ds(0, 1)].astype(jnp.float32)
           * weights_t_ref[0].astype(jnp.float32))
    for i in range(1, num_models):                 # tiny, unrolled at trace time
        acc += (mergers_t_ref[:, pl.ds(i, 1)].astype(jnp.float32)
                * weights_t_ref[i].astype(jnp.float32))
    wm_ref[...] = acc.astype(wm_ref.dtype)


def matmul_bias_kernel(x_ref, w_ref, b_ref, o_ref, acc_ref):
    """o = x @ w + b with f32 accumulation; w is pre-merged, K-major (tk, tn)."""
    k = pl.program_id(2)

    @pl.when(k == 0)
    def _():
        acc_ref[...] = jnp.zeros_like(acc_ref)

    acc_ref[...] += lax.dot_general(
        x_ref[...], w_ref[...],
        dimension_numbers=(((1,), (0,)), ((), ())),
        preferred_element_type=jnp.float32)

    @pl.when(k == pl.num_programs(2) - 1)
    def _():
        o_ref[...] = (acc_ref[...] + b_ref[...].astype(jnp.float32)).astype(o_ref.dtype)


def dam_decode_kernel(mergers_ref, weights_t_ref, b_ref, x_ref, o_ref, acc_ref,
                      *, num_models):
    """Small-M algebraic form: o = sum_i (x * merger_i) @ W_i  (W_i K-major)."""
    k = pl.program_id(1)

    @pl.when(k == 0)
    def _():
        acc_ref[...] = jnp.zeros_like(acc_ref)

    x = x_ref[...].astype(jnp.float32)
    for i in range(num_models):                    # tiny, unrolled at trace time
        xs = x * mergers_ref[pl.ds(i, 1), :].astype(jnp.float32)   # scale tiny x tile
        xs = xs.astype(weights_t_ref.dtype)
        acc_ref[...] += lax.dot_general(
            xs, weights_t_ref[i],
            dimension_numbers=(((1,), (0,)), ((), ())),
            preferred_element_type=jnp.float32)

    @pl.when(k == pl.num_programs(1) - 1)
    def _():
        o_ref[...] = (acc_ref[...] + b_ref[...].astype(jnp.float32)).astype(o_ref.dtype)


# ----------------------------------------------------------------------------------
# Forward wrapper
# ----------------------------------------------------------------------------------
def _merged_bias(params):
    N_p, OUT = params['N_p'], params['out_features']
    if params['has_bias']:
        b = jnp.sum(params['bias_mergers'].reshape(-1, 1).astype(jnp.float32)
                    * params['biases'].astype(jnp.float32), axis=0)
        b = jnp.pad(b, (0, N_p - OUT))
    else:
        b = jnp.zeros((N_p,), jnp.float32)
    return b.reshape(1, N_p)


def _merge_weights_kmajor(params, out_dtype):
    """Tiny Pallas kernel: merged weight written once to HBM in K-major layout."""
    num_models = params['num_models']
    N_p, K_p, tn, tk = params['N_p'], params['K_p'], params['tn'], params['tk']
    return pl.pallas_call(
        functools.partial(dam_merge_kernel, num_models=num_models),
        out_shape=jax.ShapeDtypeStruct((K_p, N_p), out_dtype),
        grid_spec=pltpu.PrefetchScalarGridSpec(
            num_scalar_prefetch=0,
            grid=(K_p // tk, N_p // tn),
            in_specs=[
                pl.BlockSpec((tk, num_models), lambda k, n: (k, 0)),       # mergers^T
                pl.BlockSpec((num_models, tk, tn), lambda k, n: (0, k, n)),  # W stack (K-major)
            ],
            out_specs=pl.BlockSpec((tk, tn), lambda k, n: (k, n)),
        ),
        compiler_params=pltpu.CompilerParams(
            dimension_semantics=("parallel", "parallel"),
            vmem_limit_bytes=_VMEM_LIMIT),
    )(params['mergers_t'], params['weights_t'])


def dam_linear_forward(hidden_states, params, *, tm=512, decode_m_threshold=64):
    """y = x @ (sum_i merger_i * W_i)^T + sum_i bias_merger_i * b_i."""
    *lead, IN = hidden_states.shape
    assert IN == params['in_features'], (IN, params['in_features'])
    OUT = params['out_features']
    num_models = params['num_models']
    N_p, K_p, tn, tk = params['N_p'], params['K_p'], params['tn'], params['tk']

    M = int(np.prod(lead)) if lead else 1
    sub = _sublane_multiple(hidden_states.dtype)
    x2 = hidden_states.reshape(M, IN)
    b2 = _merged_bias(params)        # O(num_models * OUT): negligible, per-call

    if M <= decode_m_threshold:
        # ---- decode path: y = sum_i (x * merger_i) @ W_i, no merged weight at all ----
        M_p = _round_up(M, sub)
        x = jnp.pad(x2, ((0, M_p - M), (0, K_p - IN)))
        out_flat = pl.pallas_call(
            functools.partial(dam_decode_kernel, num_models=num_models),
            out_shape=jax.ShapeDtypeStruct((M_p, N_p), hidden_states.dtype),
            grid_spec=pltpu.PrefetchScalarGridSpec(
                num_scalar_prefetch=0,
                grid=(N_p // tn, K_p // tk),
                in_specs=[
                    pl.BlockSpec((num_models, tk), lambda n, k: (0, k)),        # mergers
                    pl.BlockSpec((num_models, tk, tn), lambda n, k: (0, k, n)),  # W stack
                    pl.BlockSpec((1, tn), lambda n, k: (0, n)),                  # merged bias
                    pl.BlockSpec((M_p, tk), lambda n, k: (0, k)),                # x
                ],
                out_specs=pl.BlockSpec((M_p, tn), lambda n, k: (0, n)),
                scratch_shapes=[pltpu.VMEM((M_p, tn), jnp.float32)],
            ),
            compiler_params=pltpu.CompilerParams(
                dimension_semantics=("parallel", "arbitrary"),
                vmem_limit_bytes=_VMEM_LIMIT),
        )(params['mergers'], params['weights_t'], b2, x)
    else:
        # ---- prefill / training path: merge once to HBM (K-major), then plain matmul ----
        w_kmajor = _merge_weights_kmajor(params, hidden_states.dtype)
        tm_c = min(_round_up(tm, sub), _round_up(M, sub))
        M_p = _round_up(M, tm_c)
        x = jnp.pad(x2, ((0, M_p - M), (0, K_p - IN)))
        # TODO(synk): pipeline_mode=pl.Buffered(3) on the x / w specs is a small extra
        # win once HBM-bound; left at the default double buffer here.
        out_flat = pl.pallas_call(
            matmul_bias_kernel,
            out_shape=jax.ShapeDtypeStruct((M_p, N_p), hidden_states.dtype),
            grid_spec=pltpu.PrefetchScalarGridSpec(
                num_scalar_prefetch=0,
                grid=(M_p // tm_c, N_p // tn, K_p // tk),
                in_specs=[
                    pl.BlockSpec((tm_c, tk), lambda m, n, k: (m, k)),   # x
                    pl.BlockSpec((tk, tn), lambda m, n, k: (k, n)),     # merged W (K-major)
                    pl.BlockSpec((1, tn), lambda m, n, k: (0, n)),      # merged bias
                ],
                out_specs=pl.BlockSpec((tm_c, tn), lambda m, n, k: (m, n)),
                scratch_shapes=[pltpu.VMEM((tm_c, tn), jnp.float32)],
            ),
            compiler_params=pltpu.CompilerParams(
                dimension_semantics=("parallel", "parallel", "arbitrary"),
                vmem_limit_bytes=_VMEM_LIMIT),
        )(x, w_kmajor, b2)

    return out_flat[:M, :OUT].reshape(*lead, OUT)


# ----------------------------------------------------------------------------------
# Pure-JAX reference (same math as the PyTorch forward)
# ----------------------------------------------------------------------------------
def dam_linear_reference(x, weights, mergers, biases=None, bias_mergers=None):
    W = jnp.sum(mergers[:, None, :].astype(jnp.float32)
                * weights.astype(jnp.float32), axis=0)               # (OUT, IN)
    y = jnp.einsum('...i,oi->...o', x.astype(jnp.float32), W,
                   precision=lax.Precision.HIGHEST)
    if biases is not None and bias_mergers is not None:
        y = y + jnp.sum(bias_mergers.reshape(-1, 1).astype(jnp.float32)
                        * biases.astype(jnp.float32), axis=0)
    return y


if __name__ == "__main__":
    key = jax.random.PRNGKey(0)
    k_x1, k_x2, k_w, k_b, k_m, k_bm = jax.random.split(key, 6)

    NUM_MODELS = 3

    # ---- test 1: decode-sized M (algebraic per-model path), f32, with bias ----------
    B, S, IN, OUT = 2, 8, 128, 256
    weights = jax.random.normal(k_w, (NUM_MODELS, OUT, IN), jnp.float32) * 0.02
    biases = jax.random.normal(k_b, (NUM_MODELS, OUT), jnp.float32) * 0.05
    mergers = (jnp.full((NUM_MODELS, IN), 1.0 / NUM_MODELS, jnp.float32)
               + 0.01 * jax.random.normal(k_m, (NUM_MODELS, IN), jnp.float32))
    bias_mergers = (jnp.full((NUM_MODELS,), 1.0 / NUM_MODELS, jnp.float32)
                    + 0.01 * jax.random.normal(k_bm, (NUM_MODELS,), jnp.float32))
    x = jax.random.normal(k_x1, (B, S, IN), jnp.float32)

    params = prepare_dam_params(weights, mergers, biases, bias_mergers)
    out = jax.block_until_ready(dam_linear_forward(x, params))
    ref = dam_linear_reference(x, weights, mergers, biases, bias_mergers)
    np.testing.assert_allclose(np.asarray(out), np.asarray(ref), rtol=5e-3, atol=5e-3)

    # ---- test 2: larger M (pre-merged K-major weight + tiled matmul), f32, ragged dims --
    B2, S2, IN2, OUT2 = 2, 96, 160, 224
    weights2 = jax.random.normal(k_w, (NUM_MODELS, OUT2, IN2), jnp.float32) * 0.02
    biases2 = jax.random.normal(k_b, (NUM_MODELS, OUT2), jnp.float32) * 0.05
    mergers2 = (jnp.full((NUM_MODELS, IN2), 1.0 / NUM_MODELS, jnp.float32)
                + 0.01 * jax.random.normal(k_m, (NUM_MODELS, IN2), jnp.float32))
    x2 = jax.random.normal(k_x2, (B2, S2, IN2), jnp.float32)

    params2 = prepare_dam_params(weights2, mergers2, biases2, bias_mergers)
    out2 = jax.block_until_ready(dam_linear_forward(x2, params2))
    ref2 = dam_linear_reference(x2, weights2, mergers2, biases2, bias_mergers)
    np.testing.assert_allclose(np.asarray(out2), np.asarray(ref2), rtol=5e-3, atol=5e-3)

    # ---- test 3: bf16 activations + bf16-streamed parameters (no bias) ----------------
    params3 = prepare_dam_params(weights2, mergers2, param_dtype=jnp.bfloat16)
    x3 = x2.astype(jnp.bfloat16)
    out3 = jax.block_until_ready(dam_linear_forward(x3, params3))
    ref3 = dam_linear_reference(x3, weights2.astype(jnp.bfloat16),
                                mergers2.astype(jnp.bfloat16))
    np.testing.assert_allclose(np.asarray(out3, dtype=np.float32),
                               np.asarray(ref3, dtype=np.float32),
                               rtol=2e-2, atol=2e-2)

    print("KERNEL_OK")
</pallas_src>

<mosaic_0001>
module attributes {stable_mosaic.version = 11 : i64} {
  func.func @dam_decode_kernel(%arg0: i32, %arg1: i32, %arg2: memref<3x128xf32, #tpu.memory_space<vmem>>, %arg3: memref<3x128x256xf32, #tpu.memory_space<vmem>>, %arg4: memref<1x256xf32, #tpu.memory_space<vmem>>, %arg5: memref<16x128xf32, #tpu.memory_space<vmem>>, %arg6: memref<16x256xf32, #tpu.memory_space<vmem>>, %arg7: memref<16x256xf32, #tpu.memory_space<vmem>>) attributes {dimension_semantics = [#tpu.dimension_semantics<parallel>, #tpu.dimension_semantics<arbitrary>], iteration_bounds = array<i64: 1, 1>, scalar_prefetch = 0 : i64, scratch_operands = 1 : i64, tpu.core_type = #tpu.core_type<tc>, window_params = [{transform_indices = @transform_0, window_bounds = array<i64: 3, 128>}, {transform_indices = @transform_1, window_bounds = array<i64: 3, 128, 256>}, {transform_indices = @transform_2, window_bounds = array<i64: 1, 256>}, {transform_indices = @transform_3, window_bounds = array<i64: 16, 128>}, {transform_indices = @transform_4, window_bounds = array<i64: 16, 256>}]} {
    %c0_i32 = arith.constant 0 : i32
    %0 = arith.cmpi eq, %arg1, %c0_i32 : i32
    %1 = arith.extui %0 : i1 to i32
    %c0_i32_0 = arith.constant 0 : i32
    %2 = arith.cmpi ne, %1, %c0_i32_0 : i32
    scf.if %2 {
      %cst_31 = arith.constant 0.000000e+00 : f32
      %34 = vector.broadcast %cst_31 : f32 to vector<16x256xf32>
      %c0_32 = arith.constant 0 : index
      %c0_33 = arith.constant 0 : index
      %35 = vector.load %arg7[%c0_32, %c0_33] : memref<16x256xf32, #tpu.memory_space<vmem>>, vector<16x256xf32>
      tpu.vector_store %arg7[%c0_32, %c0_33], %34 {strides = array<i32>} : memref<16x256xf32, #tpu.memory_space<vmem>>, vector<16x256xf32>,
    } else {
    }
    %c0 = arith.constant 0 : index
    %c0_1 = arith.constant 0 : index
    %3 = vector.load %arg5[%c0, %c0_1] : memref<16x128xf32, #tpu.memory_space<vmem>>, vector<16x128xf32>
    %c0_2 = arith.constant 0 : index
    %c0_3 = arith.constant 0 : index
    %4 = vector.load %arg2[%c0_2, %c0_3] : memref<3x128xf32, #tpu.memory_space<vmem>>, vector<1x128xf32>
    %5 = vector.broadcast %4 : vector<1x128xf32> to vector<16x128xf32>
    %6 = arith.mulf %3, %5 : vector<16x128xf32>
    %c0_4 = arith.constant 0 : index
    %c0_5 = arith.constant 0 : index
    %7 = vector.load %arg7[%c0_4, %c0_5] : memref<16x256xf32, #tpu.memory_space<vmem>>, vector<16x256xf32>
    %c0_6 = arith.constant 0 : index
    %c0_7 = arith.constant 0 : index
    %c0_8 = arith.constant 0 : index
    %8 = vector.load %arg3[%c0_6, %c0_7, %c0_8] : memref<3x128x256xf32, #tpu.memory_space<vmem>>, vector<1x128x256xf32>
    %9 = vector.shape_cast %8 : vector<1x128x256xf32> to vector<128x256xf32>
    %cst = arith.constant dense<0.000000e+00> : vector<16x256xf32>
    %10 = tpu.matmul %6, %9, %cst {dimension_numbers = #tpu.dot_dimension_numbers<[1], [0], [0], [1], [0, 0, 1, 1], [], []>} : vector<16x128xf32>, vector<128x256xf32>, vector<16x256xf32> -> vector<16x256xf32>
    %11 = arith.addf %7, %10 : vector<16x256xf32>
    %c0_9 = arith.constant 0 : index
    %c0_10 = arith.constant 0 : index
    %12 = vector.load %arg7[%c0_9, %c0_10] : memref<16x256xf32, #tpu.memory_space<vmem>>, vector<16x256xf32>
    tpu.vector_store %arg7[%c0_9, %c0_10], %11 {strides = array<i32>} : memref<16x256xf32, #tpu.memory_space<vmem>>, vector<16x256xf32>,
    %c1 = arith.constant 1 : index
    %c0_11 = arith.constant 0 : index
    %13 = vector.load %arg2[%c1, %c0_11] : memref<3x128xf32, #tpu.memory_space<vmem>>, vector<1x128xf32>
    %14 = vector.broadcast %13 : vector<1x128xf32> to vector<16x128xf32>
    %15 = arith.mulf %3, %14 : vector<16x128xf32>
    %c0_12 = arith.constant 0 : index
    %c0_13 = arith.constant 0 : index
    %16 = vector.load %arg7[%c0_12, %c0_13] : memref<16x256xf32, #tpu.memory_space<vmem>>, vector<16x256xf32>
    %c1_14 = arith.constant 1 : index
    %c0_15 = arith.constant 0 : index
    %c0_16 = arith.constant 0 : index
    %17 = vector.load %arg3[%c1_14, %c0_15, %c0_16] : memref<3x128x256xf32, #tpu.memory_space<vmem>>, vector<1x128x256xf32>
    %18 = vector.shape_cast %17 : vector<1x128x256xf32> to vector<128x256xf32>
    %cst_17 = arith.constant dense<0.000000e+00> : vector<16x256xf32>
    %19 = tpu.matmul %15, %18, %cst_17 {dimension_numbers = #tpu.dot_dimension_numbers<[1], [0], [0], [1], [0, 0, 1, 1], [], []>} : vector<16x128xf32>, vector<128x256xf32>, vector<16x256xf32> -> vector<16x256xf32>
    %20 = arith.addf %16, %19 : vector<16x256xf32>
    %c0_18 = arith.constant 0 : index
    %c0_19 = arith.constant 0 : index
    %21 = vector.load %arg7[%c0_18, %c0_19] : memref<16x256xf32, #tpu.memory_space<vmem>>, vector<16x256xf32>
    tpu.vector_store %arg7[%c0_18, %c0_19], %20 {strides = array<i32>} : memref<16x256xf32, #tpu.memory_space<vmem>>, vector<16x256xf32>,
    %c2 = arith.constant 2 : index
    %c0_20 = arith.constant 0 : index
    %22 = vector.load %arg2[%c2, %c0_20] : memref<3x128xf32, #tpu.memory_space<vmem>>, vector<1x128xf32>
    %23 = vector.broadcast %22 : vector<1x128xf32> to vector<16x128xf32>
    %24 = arith.mulf %3, %23 : vector<16x128xf32>
    %c0_21 = arith.constant 0 : index
    %c0_22 = arith.constant 0 : index
    %25 = vector.load %arg7[%c0_21, %c0_22] : memref<16x256xf32, #tpu.memory_space<vmem>>, vector<16x256xf32>
    %c2_23 = arith.constant 2 : index
    %c0_24 = arith.constant 0 : index
    %c0_25 = arith.constant 0 : index
    %26 = vector.load %arg3[%c2_23, %c0_24, %c0_25] : memref<3x128x256xf32, #tpu.memory_space<vmem>>, vector<1x128x256xf32>
    %27 = vector.shape_cast %26 : vector<1x128x256xf32> to vector<128x256xf32>
    %cst_26 = arith.constant dense<0.000000e+00> : vector<16x256xf32>
    %28 = tpu.matmul %24, %27, %cst_26 {dimension_numbers = #tpu.dot_dimension_numbers<[1], [0], [0], [1], [0, 0, 1, 1], [], []>} : vector<16x128xf32>, vector<128x256xf32>, vector<16x256xf32> -> vector<16x256xf32>
    %29 = arith.addf %25, %28 : vector<16x256xf32>
    %c0_27 = arith.constant 0 : index
    %c0_28 = arith.constant 0 : index
    %30 = vector.load %arg7[%c0_27, %c0_28] : memref<16x256xf32, #tpu.memory_space<vmem>>, vector<16x256xf32>
    tpu.vector_store %arg7[%c0_27, %c0_28], %29 {strides = array<i32>} : memref<16x256xf32, #tpu.memory_space<vmem>>, vector<16x256xf32>,
    %c0_i32_29 = arith.constant 0 : i32
    %31 = arith.cmpi eq, %arg1, %c0_i32_29 : i32
    %32 = arith.extui %31 : i1 to i32
    %c0_i32_30 = arith.constant 0 : i32
    %33 = arith.cmpi ne, %32, %c0_i32_30 : i32
    scf.if %33 {
      %c0_31 = arith.constant 0 : index
      %c0_32 = arith.constant 0 : index
      %34 = vector.load %arg7[%c0_31, %c0_32] : memref<16x256xf32, #tpu.memory_space<vmem>>, vector<16x256xf32>
      %c0_33 = arith.constant 0 : index
      %c0_34 = arith.constant 0 : index
      %35 = vector.load %arg4[%c0_33, %c0_34] : memref<1x256xf32, #tpu.memory_space<vmem>>, vector<1x256xf32>
      %36 = vector.broadcast %35 : vector<1x256xf32> to vector<16x256xf32>
      %37 = arith.addf %34, %36 : vector<16x256xf32>
      %c0_35 = arith.constant 0 : index
      %c0_36 = arith.constant 0 : index
      %38 = vector.load %arg6[%c0_35, %c0_36] : memref<16x256xf32, #tpu.memory_space<vmem>>, vector<16x256xf32>
      tpu.vector_store %arg6[%c0_35, %c0_36], %37 {strides = array<i32>} : memref<16x256xf32, #tpu.memory_space<vmem>>, vector<16x256xf32>,
    } else {
    }
    return
  }
  func.func @transform_0(%arg0: i32, %arg1: i32) -> (i32, i32) {
    %c0_i32 = arith.constant 0 : i32
    %c0_i32_0 = arith.constant 0 : i32
    return %c0_i32, %arg1 : i32, i32
  }
  func.func @transform_1(%arg0: i32, %arg1: i32) -> (i32, i32, i32) {
    %c0_i32 = arith.constant 0 : i32
    %c0_i32_0 = arith.constant 0 : i32
    return %c0_i32, %arg1, %arg0 : i32, i32, i32
  }
  func.func @transform_2(%arg0: i32, %arg1: i32) -> (i32, i32) {
    %c0_i32 = arith.constant 0 : i32
    %c0_i32_0 = arith.constant 0 : i32
    return %c0_i32, %arg0 : i32, i32
  }
  func.func @transform_3(%arg0: i32, %arg1: i32) -> (i32, i32) {
    %c0_i32 = arith.constant 0 : i32
    %c0_i32_0 = arith.constant 0 : i32
    return %c0_i32, %arg1 : i32, i32
  }
  func.func @transform_4(%arg0: i32, %arg1: i32) -> (i32, i32) {
    %c0_i32 = arith.constant 0 : i32
    %c0_i32_0 = arith.constant 0 : i32
    return %c0_i32, %arg0 : i32, i32
  }
}

</mosaic_0001>

<llo_original>
// kernel: tpu_custom_call.1
$region0: #{tpu_custom_call.1}
  #allocation0 [shape = 'u32[]', space=smem, size = 0x4, offset = 0x4, fixed_abs, tag = 'smem constant byte address 0x4 - core index']
  #allocation1 [shape = 'u32[144,128]{1,0:T(1,128)}', space=vmem, size = 0x12000, scoped, tag = 'internal scratch']
  #allocation2 [shape = 'f32[16,256]{1,0:T(8,128)}', space=vmem, size = 0x4000, scoped, tag = 'scratch operand']
  %s0 = inlined_call_operand.hbm [shape: f32[3,128], index: 0, kind: input, shape index: {}]
  %s1 = inlined_call_operand.hbm [shape: f32[3,128,256], index: 1, kind: input, shape index: {}]
  %s2 = inlined_call_operand.vmem [shape: f32[1,256], index: 2, kind: input, shape index: {}]
  %s3 = inlined_call_operand.hbm [shape: f32[16,128], index: 3, kind: input, shape index: {}]
  %s4 = inlined_call_operand.hbm [shape: f32[16,256], index: 4, kind: output, shape index: {}]
  %s5 = sld [smem:[#allocation0]]
  $region46: #{tpu_custom_call.1} parent=0
    _
  %s7 = ssub.s32 1, %s5
  %s8 = scalar_select 0, %s7, %s5
  $region1: #{tpu_custom_call.1} parent=0
    #allocation3 [shape = 'u8[2048]{0}', space=vmem, size = 0x800, scoped, tag = 'input window, operand 0, single buffered']
    #allocation4 [shape = 's32[1]{0}', space=sflag, size = 0x4, scoped, tag = 'scoped memory for tpu_custom_call.1']
    #allocation5 [shape = 's32[1]{0}', space=sflag, size = 0x4, scoped, tag = 'scoped memory for tpu_custom_call.1']
    #allocation6 [shape = 'u8[393216]{0}', space=vmem, size = 0x60000, scoped, tag = 'input window, operand 1, single buffered']
    #allocation7 [shape = 's32[1]{0}', space=sflag, size = 0x4, scoped, tag = 'scoped memory for tpu_custom_call.1']
    #allocation8 [shape = 'u8[8192]{0}', space=vmem, size = 0x2000, scoped, tag = 'input window, operand 3, single buffered']
    #allocation9 [shape = 'u8[16384]{0}', space=vmem, size = 0x4000, scoped, tag = 'output window, operand 0, single buffered']
    %9 = vsyncpa [#allocation4], 0
    %10 = vsyncpa [#allocation7], 0
    %11 = vsyncpa [#allocation5], 0
    // Predicated region
    $region2: #{tpu_custom_call.1} parent=1 // pred_check
      _
    $region3: #{tpu_custom_call.1} parent=1 // pred_check_branch
      %13 = sbr.rel (0) target = $region5
    $region4: #{tpu_custom_call.1} parent=1 // pred_region
      %s15 = ssub.s32 64, 64
      %16 = vsyncadd [#allocation4], %s15
      %s18 = sshll.u32 [#allocation3], 4
      %s19 = int_to_ptr.vmem [resolvable:$true] %s18
      %21 = dma.hbm_to_vmem [thread:$0]  %s0, 64, %s19, [#allocation4]
    $region5: #{tpu_custom_call.1} parent=1 // pred_fallthru
      _
    // Predicated region
    $region6: #{tpu_custom_call.1} parent=1 // pred_check
      _
    $region7: #{tpu_custom_call.1} parent=1 // pred_check_branch
      %23 = sbr.rel (0) target = $region9
    $region8: #{tpu_custom_call.1} parent=1 // pred_region
      %s25 = ssub.s32 12288, 12288
      %26 = vsyncadd [#allocation7], %s25
      %s27 = sshll.u32 [#allocation6], 4
      %s28 = int_to_ptr.vmem [resolvable:$true] %s27
      %33 = dma.hbm_to_vmem [thread:$0]  %s1, 12288, %s28, [#allocation7], 256, 256, 16
    $region9: #{tpu_custom_call.1} parent=1 // pred_fallthru
      _
    // Predicated region
    $region10: #{tpu_custom_call.1} parent=1 // pred_check
      _
    $region11: #{tpu_custom_call.1} parent=1 // pred_check_branch
      %35 = sbr.rel (0) target = $region13
    $region12: #{tpu_custom_call.1} parent=1 // pred_region
      _
    $region13: #{tpu_custom_call.1} parent=1 // pred_fallthru
      _
    // Predicated region
    $region14: #{tpu_custom_call.1} parent=1 // pred_check
      _
    $region15: #{tpu_custom_call.1} parent=1 // pred_check_branch
      %37 = sbr.rel (0) target = $region17
    $region16: #{tpu_custom_call.1} parent=1 // pred_region
      %s39 = ssub.s32 256, 256
      %40 = vsyncadd [#allocation7], %s39
      %s41 = sshll.u32 [#allocation8], 4
      %s42 = int_to_ptr.vmem [resolvable:$true] %s41
      %47 = dma.hbm_to_vmem [thread:$0]  %s3, 256, %s42, [#allocation7], 128, 128, 8
    $region17: #{tpu_custom_call.1} parent=1 // pred_fallthru
      _
    // Predicated region
    $region18: #{tpu_custom_call.1} parent=1 // pred_check
      _
    $region19: #{tpu_custom_call.1} parent=1 // pred_check_branch
      %49 = sbr.rel (0) target = $region21
    $region20: #{tpu_custom_call.1} parent=1 // pred_region
      %50 = dma.done [#allocation4], 64
    $region21: #{tpu_custom_call.1} parent=1 // pred_fallthru
      _
    // Predicated region
    $region22: #{tpu_custom_call.1} parent=1 // pred_check
      _
    $region23: #{tpu_custom_call.1} parent=1 // pred_check_branch
      %52 = sbr.rel (0) target = $region25
    $region24: #{tpu_custom_call.1} parent=1 // pred_region
      %53 = dma.done [#allocation7], 12288
    $region25: #{tpu_custom_call.1} parent=1 // pred_fallthru
      _
    // Predicated region
    $region26: #{tpu_custom_call.1} parent=1 // pred_check
      _
    $region27: #{tpu_custom_call.1} parent=1 // pred_check_branch
      %55 = sbr.rel (0) target = $region29
    $region28: #{tpu_custom_call.1} parent=1 // pred_region
      %56 = dma.done [#allocation7], 256
    $region29: #{tpu_custom_call.1} parent=1 // pred_fallthru
      _
    %p57 = scmp.eq.s32.totalorder 0, 0
    // Predicated region
    $region30: #{tpu_custom_call.1} parent=1 // pred_check
      %p58 = pneg %p57
    $region31: #{tpu_custom_call.1} parent=1 // pred_check_branch
      %60 = sbr.rel (%p58) target = $region33
    $region32: #{tpu_custom_call.1} parent=1 // pred_region
      %61 = vst [vmem:[#allocation2] sm:$0xff] 0.0
      %62 = vst [vmem:[#allocation2 + $0x8] sm:$0xff] 0.0
      %63 = vst [vmem:[#allocation2 + $0x10] sm:$0xff] 0.0
      %64 = vst [vmem:[#allocation2 + $0x18] sm:$0xff] 0.0
    $region33: #{tpu_custom_call.1} parent=1 // pred_fallthru
      _
    %v65 = vld [vmem:[#allocation8] sm:$0xff]
    %v66 = vld [vmem:[#allocation8 + $0x8] sm:$0xff]
    %v67 = vld [vmem:[#allocation3] sm:$0x1]
    %v68 = vlaneseq
    %v69 = vshrl.u32 %v68, 7
    %v70 = vsub.s32 0, %v69
    %v71 = vrot.slane %v67, %v70
    %v72 = vmul.f32 %v65, %v71
    %v73 = vmul.f32 %v66, %v71
    %v74 = vld [vmem:[#allocation2] sm:$0xff]
    %v75 = vld [vmem:[#allocation2 + $0x8] sm:$0xff]
    %v76 = vld [vmem:[#allocation2 + $0x10] sm:$0xff]
    %v77 = vld [vmem:[#allocation2 + $0x18] sm:$0xff]
    %v78 = vld [vmem:[#allocation6] sm:$0xff]
    %v79 = vld [vmem:[#allocation6 + $0x8] sm:$0xff]
    %v80 = vld [vmem:[#allocation6 + $0x10] sm:$0xff]
    %v81 = vld [vmem:[#allocation6 + $0x18] sm:$0xff]
    %v82 = vld [vmem:[#allocation6 + $0x20] sm:$0xff]
    %v83 = vld [vmem:[#allocation6 + $0x28] sm:$0xff]
    %v84 = vld [vmem:[#allocation6 + $0x30] sm:$0xff]
    %v85 = vld [vmem:[#allocation6 + $0x38] sm:$0xff]
    %v86 = vld [vmem:[#allocation6 + $0x40] sm:$0xff]
    %v87 = vld [vmem:[#allocation6 + $0x48] sm:$0xff]
    %v88 = vld [vmem:[#allocation6 + $0x50] sm:$0xff]
    %v89 = vld [vmem:[#allocation6 + $0x58] sm:$0xff]
    %v90 = vld [vmem:[#allocation6 + $0x60] sm:$0xff]
    %v91 = vld [vmem:[#allocation6 + $0x68] sm:$0xff]
    %v92 = vld [vmem:[#allocation6 + $0x70] sm:$0xff]
    %v93 = vld [vmem:[#allocation6 + $0x78] sm:$0xff]
    %v94 = vld [vmem:[#allocation6 + $0x80] sm:$0xff]
    %v95 = vld [vmem:[#allocation6 + $0x88] sm:$0xff]
    %v96 = vld [vmem:[#allocation6 + $0x90] sm:$0xff]
    %v97 = vld [vmem:[#allocation6 + $0x98] sm:$0xff]
    %v98 = vld [vmem:[#allocation6 + $0xa0] sm:$0xff]
    %v99 = vld [vmem:[#allocation6 + $0xa8] sm:$0xff]
    %v100 = vld [vmem:[#allocation6 + $0xb0] sm:$0xff]
    %v101 = vld [vmem:[#allocation6 + $0xb8] sm:$0xff]
    %v102 = vld [vmem:[#allocation6 + $0xc0] sm:$0xff]
    %v103 = vld [vmem:[#allocation6 + $0xc8] sm:$0xff]
    %v104 = vld [vmem:[#allocation6 + $0xd0] sm:$0xff]
    %v105 = vld [vmem:[#allocation6 + $0xd8] sm:$0xff]
    %v106 = vld [vmem:[#allocation6 + $0xe0] sm:$0xff]
    %v107 = vld [vmem:[#allocation6 + $0xe8] sm:$0xff]
    %v108 = vld [vmem:[#allocation6 + $0xf0] sm:$0xff]
    %v109 = vld [vmem:[#allocation6 + $0xf8] sm:$0xff]
    %110 = vmatprep.subr.mxu0 %v109
    %111 = vmatpush1.msra.mxu0 %v108
    %112 = vmatprep.subr.mxu0 %v107
    %113 = vmatpush1.msra.mxu0 %v106
    %114 = vmatprep.subr.mxu0 %v105
    %115 = vmatpush1.msra.mxu0 %v104
    %116 = vmatprep.subr.mxu0 %v103
    %117 = vmatpush1.msra.mxu0 %v102
    %118 = vmatprep.subr.mxu0 %v101
    %119 = vmatpush1.msra.mxu0 %v100
    %120 = vmatprep.subr.mxu0 %v99
    %121 = vmatpush1.msra.mxu0 %v98
    %122 = vmatprep.subr.mxu0 %v97
    %123 = vmatpush1.msra.mxu0 %v96
    %124 = vmatprep.subr.mxu0 %v95
    %125 = vmatpush1.msra.mxu0 %v94
    %126 = vmatprep.subr.mxu0 %v93
    %127 = vmatpush1.msra.mxu0 %v92
    %128 = vmatprep.subr.mxu0 %v91
    %129 = vmatpush1.msra.mxu0 %v90
    %130 = vmatprep.subr.mxu0 %v89
    %131 = vmatpush1.msra.mxu0 %v88
    %132 = vmatprep.subr.mxu0 %v87
    %133 = vmatpush1.msra.mxu0 %v86
    %134 = vmatprep.subr.mxu0 %v85
    %135 = vmatpush1.msra.mxu0 %v84
    %136 = vmatprep.subr.mxu0 %v83
    %137 = vmatpush1.msra.mxu0 %v82
    %138 = vmatprep.subr.mxu0 %v81
    %139 = vmatpush1.msra.mxu0 %v80
    %140 = vmatprep.subr.mxu0 %v79
    %141 = vmatpush1.msra.mxu0 %v78
    %142 = vmatprep.subr.mxu0 0.0
    %143 = vmatpush2.msra.mxu0 0.0
    %144 = vmatprep.subr.mxu0 0.0
    %145 = vmatpush2.msra.mxu0 0.0
    %146 = vmatprep.subr.mxu0 0.0
    %147 = vmatpush2.msra.mxu0 0.0
    %148 = vmatprep.subr.mxu0 0.0
    %149 = vmatpush2.msra.mxu0 0.0
    %150 = vmatprep.subr.mxu0 0.0
    %151 = vmatpush2.msra.mxu0 0.0
    %152 = vmatprep.subr.mxu0 0.0
    %153 = vmatpush2.msra.mxu0 0.0
    %154 = vmatprep.subr.mxu0 0.0
    %155 = vmatpush2.msra.mxu0 0.0
    %156 = vmatprep.subr.mxu0 0.0
    %157 = vmatpush2.msra.mxu0 0.0
    %158 = vmatprep.subr.mxu0 0.0
    %159 = vmatpush2.msra.mxu0 0.0
    %160 = vmatprep.subr.mxu0 0.0
    %161 = vmatpush2.msra.mxu0 0.0
    %162 = vmatprep.subr.mxu0 0.0
    %163 = vmatpush2.msra.mxu0 0.0
    %164 = vmatprep.subr.mxu0 0.0
    %165 = vmatpush2.msra.mxu0 0.0
    %166 = vmatprep.subr.mxu0 0.0
    %167 = vmatpush2.msra.mxu0 0.0
    %168 = vmatprep.subr.mxu0 0.0
    %169 = vmatpush2.msra.mxu0 0.0
    %170 = vmatprep.subr.mxu0 0.0
    %171 = vmatpush2.msra.mxu0 0.0
    %172 = vmatprep.subr.mxu0 0.0
    %173 = vmatpush2.msra.mxu0 0.0
    %174 = vmatprep.mubr.f32.mxu0 0.0
    %175 = vmatmul.mubr.f32.gmra.mxu0 %v72
    %v176 = vpop.f32.mrf.mxu0
    %v177 = vadd.f32 0.0, %v176
    %v178 = vpop.f32.mrf.mxu0
    %v179 = vadd.f32 0.0, %v178
    %180 = vmatprep.mubr.f32.mxu0 0.0
    %181 = vmatmul.mubr.f32.gmra.mxu0 %v73
    %v182 = vpop.f32.mrf.mxu0
    %v183 = vadd.f32 0.0, %v182
    %v184 = vpop.f32.mrf.mxu0
    %v185 = vadd.f32 0.0, %v184
    %186 = vdwg.mxu0
    %v187 = vadd.f32 %v74, %v177
    %v188 = vadd.f32 %v75, %v179
    %v189 = vadd.f32 %v76, %v183
    %v190 = vadd.f32 %v77, %v185
    %191 = vst [vmem:[#allocation2] sm:$0xff] %v187
    %192 = vst [vmem:[#allocation2 + $0x8] sm:$0xff] %v188
    %193 = vst [vmem:[#allocation2 + $0x10] sm:$0xff] %v189
    %194 = vst [vmem:[#allocation2 + $0x18] sm:$0xff] %v190
    %v195 = vld [vmem:[#allocation3 + $0x1] sm:$0x1]
    %v196 = vlaneseq
    %v197 = vshrl.u32 %v196, 7
    %v198 = vsub.s32 0, %v197
    %v199 = vrot.slane %v195, %v198
    %v200 = vmul.f32 %v65, %v199
    %v201 = vmul.f32 %v66, %v199
    %v202 = vld [vmem:[#allocation2] sm:$0xff]
    %v203 = vld [vmem:[#allocation2 + $0x8] sm:$0xff]
    %v204 = vld [vmem:[#allocation2 + $0x10] sm:$0xff]
    %v205 = vld [vmem:[#allocation2 + $0x18] sm:$0xff]
    %s206 = scalar_lea.vmem [#allocation6], 256
    %v207 = vld [vmem:[%s206] sm:$0xff]
    %v208 = vld [vmem:[%s206 + $0x8] sm:$0xff]
    %v209 = vld [vmem:[%s206 + $0x10] sm:$0xff]
    %v210 = vld [vmem:[%s206 + $0x18] sm:$0xff]
    %v211 = vld [vmem:[%s206 + $0x20] sm:$0xff]
    %v212 = vld [vmem:[%s206 + $0x28] sm:$0xff]
    %v213 = vld [vmem:[%s206 + $0x30] sm:$0xff]
    %v214 = vld [vmem:[%s206 + $0x38] sm:$0xff]
    %v215 = vld [vmem:[%s206 + $0x40] sm:$0xff]
    %v216 = vld [vmem:[%s206 + $0x48] sm:$0xff]
    %v217 = vld [vmem:[%s206 + $0x50] sm:$0xff]
    %v218 = vld [vmem:[%s206 + $0x58] sm:$0xff]
    %v219 = vld [vmem:[%s206 + $0x60] sm:$0xff]
    %v220 = vld [vmem:[%s206 + $0x68] sm:$0xff]
    %v221 = vld [vmem:[%s206 + $0x70] sm:$0xff]
    %v222 = vld [vmem:[%s206 + $0x78] sm:$0xff]
    %v223 = vld [vmem:[%s206 + $0x80] sm:$0xff]
    %v224 = vld [vmem:[%s206 + $0x88] sm:$0xff]
    %v225 = vld [vmem:[%s206 + $0x90] sm:$0xff]
    %v226 = vld [vmem:[%s206 + $0x98] sm:$0xff]
    %v227 = vld [vmem:[%s206 + $0xa0] sm:$0xff]
    %v228 = vld [vmem:[%s206 + $0xa8] sm:$0xff]
    %v229 = vld [vmem:[%s206 + $0xb0] sm:$0xff]
    %v230 = vld [vmem:[%s206 + $0xb8] sm:$0xff]
    %v231 = vld [vmem:[%s206 + $0xc0] sm:$0xff]
    %v232 = vld [vmem:[%s206 + $0xc8] sm:$0xff]
    %v233 = vld [vmem:[%s206 + $0xd0] sm:$0xff]
    %v234 = vld [vmem:[%s206 + $0xd8] sm:$0xff]
    %v235 = vld [vmem:[%s206 + $0xe0] sm:$0xff]
    %v236 = vld [vmem:[%s206 + $0xe8] sm:$0xff]
    %v237 = vld [vmem:[%s206 + $0xf0] sm:$0xff]
    %v238 = vld [vmem:[%s206 + $0xf8] sm:$0xff]
    %239 = vmatprep.subr.mxu0 %v238
    %240 = vmatpush1.msra.mxu0 %v237
    %241 = vmatprep.subr.mxu0 %v236
    %242 = vmatpush1.msra.mxu0 %v235
    %243 = vmatprep.subr.mxu0 %v234
    %244 = vmatpush1.msra.mxu0 %v233
    %245 = vmatprep.subr.mxu0 %v232
    %246 = vmatpush1.msra.mxu0 %v231
    %247 = vmatprep.subr.mxu0 %v230
    %248 = vmatpush1.msra.mxu0 %v229
    %249 = vmatprep.subr.mxu0 %v228
    %250 = vmatpush1.msra.mxu0 %v227
    %251 = vmatprep.subr.mxu0 %v226
    %252 = vmatpush1.msra.mxu0 %v225
    %253 = vmatprep.subr.mxu0 %v224
    %254 = vmatpush1.msra.mxu0 %v223
    %255 = vmatprep.subr.mxu0 %v222
    %256 = vmatpush1.msra.mxu0 %v221
    %257 = vmatprep.subr.mxu0 %v220
    %258 = vmatpush1.msra.mxu0 %v219
    %259 = vmatprep.subr.mxu0 %v218
    %260 = vmatpush1.msra.mxu0 %v217
    %261 = vmatprep.subr.mxu0 %v216
    %262 = vmatpush1.msra.mxu0 %v215
    %263 = vmatprep.subr.mxu0 %v214
    %264 = vmatpush1.msra.mxu0 %v213
    %265 = vmatprep.subr.mxu0 %v212
    %266 = vmatpush1.msra.mxu0 %v211
    %267 = vmatprep.subr.mxu0 %v210
    %268 = vmatpush1.msra.mxu0 %v209
    %269 = vmatprep.subr.mxu0 %v208
    %270 = vmatpush1.msra.mxu0 %v207
    %271 = vmatprep.subr.mxu0 0.0
    %272 = vmatpush2.msra.mxu0 0.0
    %273 = vmatprep.subr.mxu0 0.0
    %274 = vmatpush2.msra.mxu0 0.0
    %275 = vmatprep.subr.mxu0 0.0
    %276 = vmatpush2.msra.mxu0 0.0
    %277 = vmatprep.subr.mxu0 0.0
    %278 = vmatpush2.msra.mxu0 0.0
    %279 = vmatprep.subr.mxu0 0.0
    %280 = vmatpush2.msra.mxu0 0.0
    %281 = vmatprep.subr.mxu0 0.0
    %282 = vmatpush2.msra.mxu0 0.0
    %283 = vmatprep.subr.mxu0 0.0
    %284 = vmatpush2.msra.mxu0 0.0
    %285 = vmatprep.subr.mxu0 0.0
    %286 = vmatpush2.msra.mxu0 0.0
    %287 = vmatprep.subr.mxu0 0.0
    %288 = vmatpush2.msra.mxu0 0.0
    %289 = vmatprep.subr.mxu0 0.0
    %290 = vmatpush2.msra.mxu0 0.0
    %291 = vmatprep.subr.mxu0 0.0
    %292 = vmatpush2.msra.mxu0 0.0
    %293 = vmatprep.subr.mxu0 0.0
    %294 = vmatpush2.msra.mxu0 0.0
    %295 = vmatprep.subr.mxu0 0.0
    %296 = vmatpush2.msra.mxu0 0.0
    %297 = vmatprep.subr.mxu0 0.0
    %298 = vmatpush2.msra.mxu0 0.0
    %299 = vmatprep.subr.mxu0 0.0
    %300 = vmatpush2.msra.mxu0 0.0
    %301 = vmatprep.subr.mxu0 0.0
    %302 = vmatpush2.msra.mxu0 0.0
    %303 = vmatprep.mubr.f32.mxu0 0.0
    %304 = vmatmul.mubr.f32.gmra.mxu0 %v200
    %v305 = vpop.f32.mrf.mxu0
    %v306 = vadd.f32 0.0, %v305
    %v307 = vpop.f32.mrf.mxu0
    %v308 = vadd.f32 0.0, %v307
    %309 = vmatprep.mubr.f32.mxu0 0.0
    %310 = vmatmul.mubr.f32.gmra.mxu0 %v201
    %v311 = vpop.f32.mrf.mxu0
    %v312 = vadd.f32 0.0, %v311
    %v313 = vpop.f32.mrf.mxu0
    %v314 = vadd.f32 0.0, %v313
    %315 = vdwg.mxu0
    %v316 = vadd.f32 %v202, %v306
    %v317 = vadd.f32 %v203, %v308
    %v318 = vadd.f32 %v204, %v312
    %v319 = vadd.f32 %v205, %v314
    %320 = vst [vmem:[#allocation2] sm:$0xff] %v316
    %321 = vst [vmem:[#allocation2 + $0x8] sm:$0xff] %v317
    %322 = vst [vmem:[#allocation2 + $0x10] sm:$0xff] %v318
    %323 = vst [vmem:[#allocation2 + $0x18] sm:$0xff] %v319
    %v324 = vld [vmem:[#allocation3 + $0x2] sm:$0x1]
    %v325 = vlaneseq
    %v326 = vshrl.u32 %v325, 7
    %v327 = vsub.s32 0, %v326
    %v328 = vrot.slane %v324, %v327
    %v329 = vmul.f32 %v65, %v328
    %v330 = vmul.f32 %v66, %v328
    %v331 = vld [vmem:[#allocation2] sm:$0xff]
    %v332 = vld [vmem:[#allocation2 + $0x8] sm:$0xff]
    %v333 = vld [vmem:[#allocation2 + $0x10] sm:$0xff]
    %v334 = vld [vmem:[#allocation2 + $0x18] sm:$0xff]
    %s335 = scalar_lea.vmem [#allocation6], 512
    %v336 = vld [vmem:[%s335] sm:$0xff]
    %v337 = vld [vmem:[%s335 + $0x8] sm:$0xff]
    %v338 = vld [vmem:[%s335 + $0x10] sm:$0xff]
    %v339 = vld [vmem:[%s335 + $0x18] sm:$0xff]
    %v340 = vld [vmem:[%s335 + $0x20] sm:$0xff]
    %v341 = vld [vmem:[%s335 + $0x28] sm:$0xff]
    %v342 = vld [vmem:[%s335 + $0x30] sm:$0xff]
    %v343 = vld [vmem:[%s335 + $0x38] sm:$0xff]
    %v344 = vld [vmem:[%s335 + $0x40] sm:$0xff]
    %v345 = vld [vmem:[%s335 + $0x48] sm:$0xff]
    %v346 = vld [vmem:[%s335 + $0x50] sm:$0xff]
    %v347 = vld [vmem:[%s335 + $0x58] sm:$0xff]
    %v348 = vld [vmem:[%s335 + $0x60] sm:$0xff]
    %v349 = vld [vmem:[%s335 + $0x68] sm:$0xff]
    %v350 = vld [vmem:[%s335 + $0x70] sm:$0xff]
    %v351 = vld [vmem:[%s335 + $0x78] sm:$0xff]
    %v352 = vld [vmem:[%s335 + $0x80] sm:$0xff]
    %v353 = vld [vmem:[%s335 + $0x88] sm:$0xff]
    %v354 = vld [vmem:[%s335 + $0x90] sm:$0xff]
    %v355 = vld [vmem:[%s335 + $0x98] sm:$0xff]
    %v356 = vld [vmem:[%s335 + $0xa0] sm:$0xff]
    %v357 = vld [vmem:[%s335 + $0xa8] sm:$0xff]
    %v358 = vld [vmem:[%s335 + $0xb0] sm:$0xff]
    %v359 = vld [vmem:[%s335 + $0xb8] sm:$0xff]
    %v360 = vld [vmem:[%s335 + $0xc0] sm:$0xff]
    %v361 = vld [vmem:[%s335 + $0xc8] sm:$0xff]
    %v362 = vld [vmem:[%s335 + $0xd0] sm:$0xff]
    %v363 = vld [vmem:[%s335 + $0xd8] sm:$0xff]
    %v364 = vld [vmem:[%s335 + $0xe0] sm:$0xff]
    %v365 = vld [vmem:[%s335 + $0xe8] sm:$0xff]
    %v366 = vld [vmem:[%s335 + $0xf0] sm:$0xff]
    %v367 = vld [vmem:[%s335 + $0xf8] sm:$0xff]
    %368 = vmatprep.subr.mxu0 %v367
    %369 = vmatpush1.msra.mxu0 %v366
    %370 = vmatprep.subr.mxu0 %v365
    %371 = vmatpush1.msra.mxu0 %v364
    %372 = vmatprep.subr.mxu0 %v363
    %373 = vmatpush1.msra.mxu0 %v362
    %374 = vmatprep.subr.mxu0 %v361
    %375 = vmatpush1.msra.mxu0 %v360
    %376 = vmatprep.subr.mxu0 %v359
    %377 = vmatpush1.msra.mxu0 %v358
    %378 = vmatprep.subr.mxu0 %v357
    %379 = vmatpush1.msra.mxu0 %v356
    %380 = vmatprep.subr.mxu0 %v355
    %381 = vmatpush1.msra.mxu0 %v354
    %382 = vmatprep.subr.mxu0 %v353
    %383 = vmatpush1.msra.mxu0 %v352
    %384 = vmatprep.subr.mxu0 %v351
    %385 = vmatpush1.msra.mxu0 %v350
    %386 = vmatprep.subr.mxu0 %v349
    %387 = vmatpush1.msra.mxu0 %v348
    %388 = vmatprep.subr.mxu0 %v347
    %389 = vmatpush1.msra.mxu0 %v346
    %390 = vmatprep.subr.mxu0 %v345
    %391 = vmatpush1.msra.mxu0 %v344
    %392 = vmatprep.subr.mxu0 %v343
    %393 = vmatpush1.msra.mxu0 %v342
    %394 = vmatprep.subr.mxu0 %v341
    %395 = vmatpush1.msra.mxu0 %v340
    %396 = vmatprep.subr.mxu0 %v339
    %397 = vmatpush1.msra.mxu0 %v338
    %398 = vmatprep.subr.mxu0 %v337
    %399 = vmatpush1.msra.mxu0 %v336
    %400 = vmatprep.subr.mxu0 0.0
    %401 = vmatpush2.msra.mxu0 0.0
    %402 = vmatprep.subr.mxu0 0.0
    %403 = vmatpush2.msra.mxu0 0.0
    %404 = vmatprep.subr.mxu0 0.0
    %405 = vmatpush2.msra.mxu0 0.0
    %406 = vmatprep.subr.mxu0 0.0
    %407 = vmatpush2.msra.mxu0 0.0
    %408 = vmatprep.subr.mxu0 0.0
    %409 = vmatpush2.msra.mxu0 0.0
    %410 = vmatprep.subr.mxu0 0.0
    %411 = vmatpush2.msra.mxu0 0.0
    %412 = vmatprep.subr.mxu0 0.0
    %413 = vmatpush2.msra.mxu0 0.0
    %414 = vmatprep.subr.mxu0 0.0
    %415 = vmatpush2.msra.mxu0 0.0
    %416 = vmatprep.subr.mxu0 0.0
    %417 = vmatpush2.msra.mxu0 0.0
    %418 = vmatprep.subr.mxu0 0.0
    %419 = vmatpush2.msra.mxu0 0.0
    %420 = vmatprep.subr.mxu0 0.0
    %421 = vmatpush2.msra.mxu0 0.0
    %422 = vmatprep.subr.mxu0 0.0
    %423 = vmatpush2.msra.mxu0 0.0
    %424 = vmatprep.subr.mxu0 0.0
    %425 = vmatpush2.msra.mxu0 0.0
    %426 = vmatprep.subr.mxu0 0.0
    %427 = vmatpush2.msra.mxu0 0.0
    %428 = vmatprep.subr.mxu0 0.0
    %429 = vmatpush2.msra.mxu0 0.0
    %430 = vmatprep.subr.mxu0 0.0
    %431 = vmatpush2.msra.mxu0 0.0
    %432 = vmatprep.mubr.f32.mxu0 0.0
    %433 = vmatmul.mubr.f32.gmra.mxu0 %v329
    %v434 = vpop.f32.mrf.mxu0
    %v435 = vadd.f32 0.0, %v434
    %v436 = vpop.f32.mrf.mxu0
    %v437 = vadd.f32 0.0, %v436
    %438 = vmatprep.mubr.f32.mxu0 0.0
    %439 = vmatmul.mubr.f32.gmra.mxu0 %v330
    %v440 = vpop.f32.mrf.mxu0
    %v441 = vadd.f32 0.0, %v440
    %v442 = vpop.f32.mrf.mxu0
    %v443 = vadd.f32 0.0, %v442
    %444 = vdwg.mxu0
    %v445 = vadd.f32 %v331, %v435
    %v446 = vadd.f32 %v332, %v437
    %v447 = vadd.f32 %v333, %v441
    %v448 = vadd.f32 %v334, %v443
    %449 = vst [vmem:[#allocation2] sm:$0xff] %v445
    %450 = vst [vmem:[#allocation2 + $0x8] sm:$0xff] %v446
    %451 = vst [vmem:[#allocation2 + $0x10] sm:$0xff] %v447
    %452 = vst [vmem:[#allocation2 + $0x18] sm:$0xff] %v448
    // Predicated region
    $region34: #{tpu_custom_call.1} parent=1 // pred_check
      %p453 = pneg %p57
    $region35: #{tpu_custom_call.1} parent=1 // pred_check_branch
      %455 = sbr.rel (%p453) target = $region37
    $region36: #{tpu_custom_call.1} parent=1 // pred_region
      %v456 = vld [vmem:[#allocation2] sm:$0xff]
      %v457 = vld [vmem:[#allocation2 + $0x8] sm:$0xff]
      %v458 = vld [vmem:[#allocation2 + $0x10] sm:$0xff]
      %v459 = vld [vmem:[#allocation2 + $0x18] sm:$0xff]
      %v460 = vld [vmem:[%s2] sm:$0x3]
      %v462 = vlaneseq
      %v463 = vshrl.u32 %v462, 7
      %v464 = vsub.s32 0, %v463
      %v465 = vrot.slane %v460, %v464
      %v466 = vlaneseq
      %v467 = vshrl.u32 %v466, 7
      %v468 = vsub.s32 1, %v467
      %v469 = vrot.slane %v460, %v468
      %v472 = vadd.f32 %v456, %v465
      %v473 = vadd.f32 %v457, %v469
      %v474 = vadd.f32 %v458, %v465
      %v475 = vadd.f32 %v459, %v469
      %476 = vst [vmem:[#allocation9] sm:$0xff] %v472
      %477 = vst [vmem:[#allocation9 + $0x8] sm:$0xff] %v473
      %478 = vst [vmem:[#allocation9 + $0x10] sm:$0xff] %v474
      %479 = vst [vmem:[#allocation9 + $0x18] sm:$0xff] %v475
    $region37: #{tpu_custom_call.1} parent=1 // pred_fallthru
      _
    // Predicated region
    $region38: #{tpu_custom_call.1} parent=1 // pred_check
      _
    $region39: #{tpu_custom_call.1} parent=1 // pred_check_branch
      %481 = sbr.rel (0) target = $region41
    $region40: #{tpu_custom_call.1} parent=1 // pred_region
      %s483 = ssub.s32 512, 512
      %484 = vsyncadd [#allocation5], %s483
      %s485 = sshll.u32 [#allocation9], 4
      %s486 = int_to_ptr.vmem [resolvable:$true] %s485
      %491 = dma.vmem_to_hbm [thread:$0]  %s486, 512, %s4, [#allocation5], 256, 256, 16
    $region41: #{tpu_custom_call.1} parent=1 // pred_fallthru
      _
    // Predicated region
    $region42: #{tpu_custom_call.1} parent=1 // pred_check
      _
    $region43: #{tpu_custom_call.1} parent=1 // pred_check_branch
      %493 = sbr.rel (0) target = $region45
    $region44: #{tpu_custom_call.1} parent=1 // pred_region
      %494 = dma.done [#allocation5], 512
    $region45: #{tpu_custom_call.1} parent=1 // pred_fallthru
      _
    %495 = vsyncpa [#allocation4], 1
    %496 = vsyncpa [#allocation7], 1
    %497 = vsyncpa [#allocation5], 1

</llo_original>
